<compile_context>
chip_gen: v7x
topology: tpu7x:2x2x1
jax: 0.10.0
libtpu: 0.0.40
codegen_flags: <defaults>
</compile_context>

<pallas_src>
import functools

import jax
import jax.numpy as jnp
from jax.experimental import pallas as pl
from jax.experimental.pallas import tpu as pltpu


def _sparse_threshold_kernel(thr_ref, x_ref, o_ref):
    """Zero out entries <= threshold.

    thr_ref : (1, 1) f32 scalar in SMEM  -- the single shared threshold
    x_ref   : (tm, width) tile in VMEM
    o_ref   : (tm, width) tile in VMEM
    """
    t = thr_ref[0, 0].astype(x_ref.dtype)   # compare in x's dtype (no promotion)
    x = x_ref[...]
    o_ref[...] = jnp.where(x > t, x, jnp.zeros_like(x))


def _choose_slab(shape):
    """Pick a lane-dense 2-D view (rows, width) of the flat element buffer.

    The op is elementwise over a contiguous buffer, so any reshape of the flat
    N*C*L elements is a free bitcast.  Prefer a wide, 128-multiple last dim for
    unmasked full-lane stores; fall back to the natural (N*C, L) view when the
    element count has no such divisor (full-extent block dims are always legal).
    """
    N, C, L = shape
    total = N * C * L
    for width in (8192, 4096, 2048, 1024, 512, 256, 128):
        if total % width == 0:
            return total // width, width
    return N * C, L


# ~2 MiB blocks: ~85%+ of HBM streaming roofline, and 4x block bytes
# (double-buffered in + out) stays inside every chip's scoped-VMEM default.
_TARGET_BLOCK_BYTES = 2 * 1024 * 1024


@functools.partial(jax.jit, static_argnames=("donate_input",))
def spatially_sparse_across_channels(x, threshold, *, donate_input=False):
    """JAX/Pallas equivalent of SpatiallySparseAcrossChannels.forward.

    x            : (N, C, L) array
    threshold    : scalar (the single shared threshold of the inner
                   SpatiallySparseByChannel(sparsity, 1) layer)
    donate_input : if True, alias the output onto x's buffer (caller must be
                   able to give up x).
    returns      : (N, C, L) array, same dtype as x
    """
    N, C, L = x.shape
    total = N * C * L
    itemsize = jnp.dtype(x.dtype).itemsize

    # Lane-dense 2-D view of the contiguous element buffer (free bitcast).
    rows, width = _choose_slab((N, C, L))
    x2 = x.reshape(rows, width)

    # Row tile sized by bytes, multiple of 8 sublanes; full-dim if small.
    tm = _TARGET_BLOCK_BYTES // max(1, width * itemsize)
    tm = max(8, (tm // 8) * 8)
    if tm >= rows:
        tm = rows  # single block along rows (full-extent dim is always legal)

    grid = (pl.cdiv(rows, tm),)  # ragged last block is masked by Pallas

    thr = jnp.asarray(threshold, jnp.float32).reshape(1, 1)

    cost = pl.CostEstimate(
        flops=total,                          # one compare+select per element
        transcendentals=0,
        bytes_accessed=2 * total * itemsize,  # one read + one write pass
    )

    out = pl.pallas_call(
        _sparse_threshold_kernel,
        out_shape=jax.ShapeDtypeStruct((rows, width), x.dtype),
        grid=grid,
        in_specs=[
            pl.BlockSpec(memory_space=pltpu.MemorySpace.SMEM),  # threshold scalar
            pl.BlockSpec((tm, width), lambda i: (i, 0)),        # x row-tiles
        ],
        out_specs=pl.BlockSpec((tm, width), lambda i: (i, 0)),
        compiler_params=pltpu.CompilerParams(
            dimension_semantics=("parallel",),
        ),
        cost_estimate=cost,
        input_output_aliases=({1: 0} if donate_input else {}),
    )(thr, x2)

    return out.reshape(N, C, L)


if __name__ == "__main__":
    key = jax.random.PRNGKey(0)

    # Deterministic parameter: the inner SpatiallySparseByChannel(sparsity, 1)
    # holds a single threshold (init 0.0, updated during training); use a fixed
    # nonzero value so the sparsification is exercised.
    # TODO(synk): the training-time update_sparsity / set_sparsity threshold
    # calibration is stateful host-side logic, not part of the forward hot
    # path, so it is not implemented here.
    threshold = jnp.float32(0.25)

    shapes = [
        (2, 4, 128),     # lane-dense slab path (total % 128 == 0)
        (2, 3, 100),     # fallback (N*C, L) path, L not a multiple of 128
        (9, 8, 16384),   # multi-step row grid with a ragged (masked) last block
    ]
    for shape in shapes:
        key, sub = jax.random.split(key)
        x = jax.random.normal(sub, shape, dtype=jnp.float32)

        out = jax.block_until_ready(spatially_sparse_across_channels(x, threshold))

        # Pure-JAX reference: forward(x) == where(x > thresh, x, 0)
        ref = jnp.where(x > threshold, x, jnp.zeros_like(x))
        assert out.shape == x.shape, f"shape mismatch at {shape}"
        assert out.dtype == x.dtype, f"dtype mismatch at {shape}"
        assert jnp.allclose(out, ref), f"Pallas kernel mismatch vs reference at {shape}"

    print("KERNEL_OK")
</pallas_src>

<mosaic_0001>
module attributes {stable_mosaic.version = 11 : i64} {
  func.func @_sparse_threshold_kernel(%arg0: i32, %arg1: memref<1x1xf32, #tpu.memory_space<smem>>, %arg2: memref<1x1024xf32, #tpu.memory_space<vmem>>, %arg3: memref<1x1024xf32, #tpu.memory_space<vmem>>) attributes {dimension_semantics = [#tpu.dimension_semantics<parallel>], iteration_bounds = array<i64: 1>, scalar_prefetch = 0 : i64, scratch_operands = 0 : i64, tpu.core_type = #tpu.core_type<tc>, window_params = [{transform_indices = @transform_0, window_bounds = array<i64: 1, 1>}, {transform_indices = @transform_1, window_bounds = array<i64: 1, 1024>}, {transform_indices = @transform_2, window_bounds = array<i64: 1, 1024>}]} {
    %c0 = arith.constant 0 : index
    %c0_0 = arith.constant 0 : index
    %0 = memref.load %arg1[%c0, %c0_0] : memref<1x1xf32, #tpu.memory_space<smem>>
    %c0_1 = arith.constant 0 : index
    %c0_2 = arith.constant 0 : index
    %1 = vector.load %arg2[%c0_1, %c0_2] : memref<1x1024xf32, #tpu.memory_space<vmem>>, vector<1x1024xf32>
    %2 = vector.broadcast %0 : f32 to vector<1x1024xf32>
    %3 = arith.cmpf ogt, %1, %2 : vector<1x1024xf32>
    %cst = arith.constant 0.000000e+00 : f32
    %4 = vector.broadcast %cst : f32 to vector<1x1024xf32>
    %5 = arith.select %3, %1, %4 : vector<1x1024xi1>, vector<1x1024xf32>
    %c0_3 = arith.constant 0 : index
    %c0_4 = arith.constant 0 : index
    %6 = vector.load %arg3[%c0_3, %c0_4] : memref<1x1024xf32, #tpu.memory_space<vmem>>, vector<1x1024xf32>
    tpu.vector_store %arg3[%c0_3, %c0_4], %5 {strides = array<i32>} : memref<1x1024xf32, #tpu.memory_space<vmem>>, vector<1x1024xf32>,
    return
  }
  func.func @transform_0(%arg0: i32) -> (i32, i32) {
    %c0_i32 = arith.constant 0 : i32
    %c0_i32_0 = arith.constant 0 : i32
    %c0_i32_1 = arith.constant 0 : i32
    return %c0_i32, %c0_i32_0 : i32, i32
  }
  func.func @transform_1(%arg0: i32) -> (i32, i32) {
    %c0_i32 = arith.constant 0 : i32
    %c0_i32_0 = arith.constant 0 : i32
    return %arg0, %c0_i32 : i32, i32
  }
  func.func @transform_2(%arg0: i32) -> (i32, i32) {
    %c0_i32 = arith.constant 0 : i32
    %c0_i32_0 = arith.constant 0 : i32
    return %arg0, %c0_i32 : i32, i32
  }
}

</mosaic_0001>

<llo_original>
// kernel: spatially_sparse_across_channels.1
$region0: #{spatially_sparse_across_channels.1}
  #allocation0 [shape = 'u32[]', space=smem, size = 0x4, offset = 0x4, fixed_abs, tag = 'smem constant byte address 0x4 - core index']
  #allocation1 [shape = 'u32[144,128]{1,0:T(1,128)}', space=vmem, size = 0x12000, scoped, tag = 'internal scratch']
  #allocation2 [shape = 'f32[1,1]{1,0:T(1,128)S(6)}', space=smem, size = 0x200, scoped, tag = 'scoped memory for spatially_sparse_across_channels.1']
  %s0 = inlined_call_operand.<no memory space> [shape: f32[1,1], index: 0, kind: input, shape index: {}]
  %s1 = inlined_call_operand.vmem [shape: f32[1,1024], index: 1, kind: input, shape index: {}]
  %s2 = inlined_call_operand.hbm [shape: f32[1,1024], index: 2, kind: output, shape index: {}]
  %s3 = sld [smem:[#allocation0]]
  $region18: #{spatially_sparse_across_channels.1} parent=0
    _
  %s5 = ssub.s32 1, %s3
  %s6 = scalar_select 0, %s5, %s3
  %7 = sst [smem:[#allocation2]] %s0
  $region1: #{spatially_sparse_across_channels.1} parent=0
    #allocation3 [shape = 'u8[4096]{0}', space=vmem, size = 0x1000, scoped, tag = 'output window, operand 0, single buffered']
    #allocation4 [shape = 's32[1]{0}', space=sflag, size = 0x4, scoped, tag = 'scoped memory for spatially_sparse_across_channels.1']
    %8 = vsyncpa [#allocation4], 0
    // Predicated region
    $region2: #{spatially_sparse_across_channels.1} parent=1 // pred_check
      _
    $region3: #{spatially_sparse_across_channels.1} parent=1 // pred_check_branch
      %10 = sbr.rel (0) target = $region5
    $region4: #{spatially_sparse_across_channels.1} parent=1 // pred_region
      _
    $region5: #{spatially_sparse_across_channels.1} parent=1 // pred_fallthru
      _
    // Predicated region
    $region6: #{spatially_sparse_across_channels.1} parent=1 // pred_check
      _
    $region7: #{spatially_sparse_across_channels.1} parent=1 // pred_check_branch
      %12 = sbr.rel (0) target = $region9
    $region8: #{spatially_sparse_across_channels.1} parent=1 // pred_region
      _
    $region9: #{spatially_sparse_across_channels.1} parent=1 // pred_fallthru
      _
    %s13 = sld [smem:[#allocation2]]
    %v14 = vld [vmem:[%s1] sm:$0xff]
    %v15 = vstv %s13
    %vm16 = vcmp.gt.f32.partialorder %v14, %v15
    %v17 = vsel %vm16, %v14, 0.0
    %18 = vst [vmem:[#allocation3] sm:$0xff] %v17
    // Predicated region
    $region10: #{spatially_sparse_across_channels.1} parent=1 // pred_check
      _
    $region11: #{spatially_sparse_across_channels.1} parent=1 // pred_check_branch
      %20 = sbr.rel (0) target = $region13
    $region12: #{spatially_sparse_across_channels.1} parent=1 // pred_region
      %s22 = ssub.s32 128, 128
      %23 = vsyncadd [#allocation4], %s22
      %s25 = sshll.u32 [#allocation3], 4
      %s26 = int_to_ptr.vmem [resolvable:$true] %s25
      %28 = dma.vmem_to_hbm [thread:$0]  %s26, 128, %s2, [#allocation4]
    $region13: #{spatially_sparse_across_channels.1} parent=1 // pred_fallthru
      _
    // Predicated region
    $region14: #{spatially_sparse_across_channels.1} parent=1 // pred_check
      _
    $region15: #{spatially_sparse_across_channels.1} parent=1 // pred_check_branch
      %30 = sbr.rel (0) target = $region17
    $region16: #{spatially_sparse_across_channels.1} parent=1 // pred_region
      %31 = dma.done [#allocation4], 128
    $region17: #{spatially_sparse_across_channels.1} parent=1 // pred_fallthru
      _
    %32 = vsyncpa [#allocation4], 1

</llo_original>
